<compile_context>
chip_gen: v6e
topology: v6e:2x2x1
jax: 0.10.0
libtpu: 0.0.40
codegen_flags: <defaults>
</compile_context>

<pallas_src>
import math

import jax
import jax.numpy as jnp
from jax.experimental import pallas as pl
from jax.experimental.pallas import tpu as pltpu


def _decompose(n: int):
    e = int(math.log2(n))
    e1 = e // 2
    e2 = e - e // 2
    return 2 ** e1, 2 ** e2


# ----------------------------------------------------------------------------
# Exact-erf GELU (nn.GELU() default), Mosaic-friendly (mul/add/exp/div only).
# ----------------------------------------------------------------------------
_ERF_A = (0.254829592, -0.284496736, 1.421413741, -1.453152027, 1.061405429)
_ERF_P = 0.3275911
_INV_SQRT2 = 0.7071067811865476


def _gelu_exact(x):
    """GELU(x) = 0.5*x*(1+erf(x/sqrt(2))) with A&S 7.1.26 erf (~1.5e-7 abs err).

    Sign folded into |x|:  GELU(x) = 0.5*(x + |x|*erf(|x|/sqrt(2))).
    The divide is exact (no approx reciprocal: its error blows up through the
    degree-5 polynomial and fails a 2e-4 tolerance). exp rides the EUP slot.
    """
    a1, a2, a3, a4, a5 = _ERF_A
    ax = jnp.abs(x)
    z = ax * _INV_SQRT2
    t = 1.0 / (1.0 + _ERF_P * z)
    poly = ((((a5 * t + a4) * t + a3) * t + a2) * t + a1) * t
    erf_ax = 1.0 - poly * jnp.exp(-z * z)          # erf(z) for z >= 0
    return 0.5 * (x + ax * erf_ax)


# ----------------------------------------------------------------------------
# Kernel: one fused (tm, Cp_in) x (Cp_in, Cp_in) -> GELU -> (Cp_in, Cp_out) tile.
# ----------------------------------------------------------------------------
def des_kernel(x_ref, m1_ref, b1_ref, m2_ref, b2_ref, o_ref):
    x = x_ref[...]
    h = jnp.dot(x, m1_ref[...], preferred_element_type=jnp.float32) + b1_ref[...]
    g = _gelu_exact(h)
    o = jnp.dot(g.astype(m2_ref.dtype), m2_ref[...],
                preferred_element_type=jnp.float32) + b2_ref[...]
    o_ref[...] = o.astype(o_ref.dtype)


# ----------------------------------------------------------------------------
# Tiling / packing heuristics.
# ----------------------------------------------------------------------------
def _default_target_lanes() -> int:
    # v6e / v7x: 256x256 MXU -> feed 256 lanes. v5e and older: 128x128 -> 128.
    try:
        kind = jax.devices()[0].device_kind.lower()
    except Exception:
        return 128
    for old in ("v2", "v3", "v4", "v5"):
        if old in kind:
            return 128
    return 256


def _lane_pack_factor(c: int, target_lanes: int) -> int:
    # Pack tokens per row until the row is `target_lanes` wide (lane-dense stores,
    # full-width MXU feed). Falls back to 1 if C doesn't divide the target.
    if c >= target_lanes or target_lanes % c != 0:
        return 1
    return target_lanes // c


def _choose_row_tile(rows: int, *, min_tile: int = 8, max_tile: int = 2048) -> int:
    """Row tile: single grid step for small problems, big tiles (<=2048) otherwise.

    max_tile=2048 keeps double-buffered in/out tiles + intermediates well under
    every generation's scoped-VMEM default (including v7x's 64 MiB physical VMEM).
    min_tile is the sublane tile (8 rows f32 / 16 rows bf16).
    """
    if rows <= min_tile:
        return rows                      # one block == full array (always legal)
    if rows <= max_tile:
        return (rows // min_tile) * min_tile   # single step (+ tiny edge block)
    for cand in (2048, 1024, 512, 256):
        if cand <= max_tile and rows >= 2 * cand:
            return cand
    return max_tile


# ----------------------------------------------------------------------------
# Parameter glue (run ONCE per weight set -- hoisted out of the hot path).
# ----------------------------------------------------------------------------
def des_prepare(w_r, b_r, w_l, b_l, *, dtype=jnp.float32, target_lanes=None):
    """Fold the DES reshapes/transposes into dense fused matrices (exact 0/1 placement)."""
    if target_lanes is None:
        target_lanes = _default_target_lanes()

    w_r = jnp.asarray(w_r, dtype)
    b_r = jnp.asarray(b_r, dtype)
    w_l = jnp.asarray(w_l, dtype)
    b_l = jnp.asarray(b_l, dtype)

    p = w_r.shape[0]
    k_out, k_in = w_l.shape
    C = k_in * p
    C_out = k_out * p

    M1 = jnp.kron(jnp.eye(k_in, dtype=dtype), w_r.T)                                # (C, C)
    b1 = jnp.tile(b_r, k_in).reshape(1, C)                                          # (1, C)
    M2 = jnp.einsum("jk,qr->kqjr", w_l, jnp.eye(p, dtype=dtype)).reshape(C, C_out)  # (C, C_out)
    b2 = jnp.repeat(b_l, p).reshape(1, C_out)                                       # (1, C_out)

    # Lane packing: `pack` tokens per row (block-diagonal weights); math is identical.
    pack = _lane_pack_factor(C, target_lanes)
    if pack > 1:
        eye_pack = jnp.eye(pack, dtype=dtype)
        M1 = jnp.kron(eye_pack, M1)
        M2 = jnp.kron(eye_pack, M2)
        b1 = jnp.tile(b1, (1, pack))
        b2 = jnp.tile(b2, (1, pack))
    return M1, b1, M2, b2


# ----------------------------------------------------------------------------
# Hot path.
# ----------------------------------------------------------------------------
def des_apply(x, M1, b1, M2, b2):
    """x: (B, N, C) -> (B, N, C_out). M*/b* come from des_prepare()."""
    B, N, C = x.shape
    Cp_in = M1.shape[0]
    Cp_out = M2.shape[1]
    pack = Cp_in // C
    C_out = Cp_out // pack
    dtype = x.dtype

    T = B * N
    T_packed = pl.cdiv(T, pack) * pack
    x2d = x.reshape(T, C)
    if T_packed != T:
        # Only a (<pack)-row tail pad so the lane-packing reshape is contiguous;
        # row-tile raggedness is handled by Pallas edge-block clipping below.
        x2d = jnp.pad(x2d, ((0, T_packed - T), (0, 0)))
    rows = T_packed // pack
    xp = x2d.reshape(rows, Cp_in)          # free reshape (contiguous)

    min_tile = 8 * (4 // jnp.dtype(dtype).itemsize)   # 8 rows f32, 16 rows bf16
    tm = _choose_row_tile(rows, min_tile=min_tile)
    grid = (pl.cdiv(rows, tm),)            # last block may be partial -> clipped

    out_p = pl.pallas_call(
        des_kernel,
        out_shape=jax.ShapeDtypeStruct((rows, Cp_out), dtype),
        grid=grid,
        in_specs=[
            pl.BlockSpec((tm, Cp_in), lambda i: (i, 0)),       # x tile (lane-packed)
            pl.BlockSpec((Cp_in, Cp_in), lambda i: (0, 0)),    # M1 (resident)
            pl.BlockSpec((1, Cp_in), lambda i: (0, 0)),        # b1
            pl.BlockSpec((Cp_in, Cp_out), lambda i: (0, 0)),   # M2 (resident)
            pl.BlockSpec((1, Cp_out), lambda i: (0, 0)),       # b2
        ],
        out_specs=pl.BlockSpec((tm, Cp_out), lambda i: (i, 0)),
        compiler_params=pltpu.CompilerParams(dimension_semantics=("parallel",)),
    )(xp, M1.astype(dtype), b1.astype(dtype), M2.astype(dtype), b2.astype(dtype))

    out2d = out_p.reshape(T_packed, C_out)
    if T_packed != T:
        out2d = out2d[:T]
    return out2d.reshape(B, N, C_out)


def des_forward(x, w_r, b_r, w_l, b_l, *, target_lanes=None):
    """One-shot convenience wrapper (prepare + apply)."""
    params = des_prepare(w_r, b_r, w_l, b_l, dtype=x.dtype, target_lanes=target_lanes)
    return des_apply(x, *params)


# ----------------------------------------------------------------------------
# Pure-JAX reference mirroring the PyTorch forward.
# ----------------------------------------------------------------------------
def des_reference(x, w_r, b_r, w_l, b_l):
    B, N, C = x.shape
    p = w_r.shape[0]
    k_in = C // p
    xr = x.reshape(B, N, k_in, p)
    y = jnp.einsum("bnkp,qp->bnkq", xr, w_r) + b_r          # proj_right
    y = jnp.swapaxes(y, -1, -2)                              # transpose(-1,-2)
    g = jax.nn.gelu(y, approximate=False)                    # nn.GELU() (exact erf)
    w = jnp.einsum("bnqk,jk->bnqj", g, w_l) + b_l            # proj_left
    w = jnp.swapaxes(w, -1, -2)                              # transpose(-1,-2)
    return w.reshape(B, N, -1)                               # flatten(-2,-1)


if __name__ == "__main__":
    # Module config: in_features = out_features = 32  ->  _decompose(32) = (4, 8)
    in_features = 32
    out_features = 32
    _, p = _decompose(min(in_features, out_features))
    k_in = in_features // p
    k_out = out_features // p

    key = jax.random.PRNGKey(0)
    kx, kwr, kbr, kwl, kbl = jax.random.split(key, 5)

    # PyTorch-Linear-style uniform init bounds.
    bound_r = 1.0 / math.sqrt(p)
    w_r = jax.random.uniform(kwr, (p, p), jnp.float32, -bound_r, bound_r)         # proj_right.weight
    b_r = jax.random.uniform(kbr, (p,), jnp.float32, -bound_r, bound_r)           # proj_right.bias
    bound_l = 1.0 / math.sqrt(k_in)
    w_l = jax.random.uniform(kwl, (k_out, k_in), jnp.float32, -bound_l, bound_l)  # proj_left.weight
    b_l = jax.random.uniform(kbl, (k_out,), jnp.float32, -bound_l, bound_l)       # proj_left.bias

    # Build the fused matrices ONCE (hoisted glue), jit only the hot path.
    params = des_prepare(w_r, b_r, w_l, b_l, dtype=jnp.float32)
    des_apply_jit = jax.jit(des_apply)

    # Tile-aligned token count and a ragged one (exercises edge-block / tail-pad path).
    for (B, N) in ((2, 64), (2, 197)):
        x = jax.random.normal(jax.random.fold_in(kx, N), (B, N, in_features), jnp.float32)

        out = jax.block_until_ready(des_apply_jit(x, *params))
        ref = des_reference(x, w_r, b_r, w_l, b_l)

        assert out.shape == (B, N, out_features), out.shape
        max_err = float(jnp.max(jnp.abs(out - ref)))
        # A&S erf polynomial (~1.5e-7) with exact divide -> well under tolerance.
        assert jnp.allclose(out, ref, rtol=1e-4, atol=2e-4), max_err

    print("KERNEL_OK")
</pallas_src>

<mosaic_0001>
module attributes {stable_mosaic.version = 11 : i64} {
  func.func @des_kernel(%arg0: i32, %arg1: memref<16x256xf32, #tpu.memory_space<vmem>>, %arg2: memref<256x256xf32, #tpu.memory_space<vmem>>, %arg3: memref<1x256xf32, #tpu.memory_space<vmem>>, %arg4: memref<256x256xf32, #tpu.memory_space<vmem>>, %arg5: memref<1x256xf32, #tpu.memory_space<vmem>>, %arg6: memref<16x256xf32, #tpu.memory_space<vmem>>) attributes {dimension_semantics = [#tpu.dimension_semantics<parallel>], iteration_bounds = array<i64: 1>, scalar_prefetch = 0 : i64, scratch_operands = 0 : i64, tpu.core_type = #tpu.core_type<tc>, window_params = [{transform_indices = @transform_0, window_bounds = array<i64: 16, 256>}, {pipeline_mode = #tpu.pipeline_mode<synchronous>, transform_indices = @transform_1, window_bounds = array<i64: 256, 256>}, {pipeline_mode = #tpu.pipeline_mode<synchronous>, transform_indices = @transform_2, window_bounds = array<i64: 1, 256>}, {pipeline_mode = #tpu.pipeline_mode<synchronous>, transform_indices = @transform_3, window_bounds = array<i64: 256, 256>}, {pipeline_mode = #tpu.pipeline_mode<synchronous>, transform_indices = @transform_4, window_bounds = array<i64: 1, 256>}, {transform_indices = @transform_5, window_bounds = array<i64: 16, 256>}]} {
    %c0 = arith.constant 0 : index
    %c0_0 = arith.constant 0 : index
    %0 = vector.load %arg1[%c0, %c0_0] : memref<16x256xf32, #tpu.memory_space<vmem>>, vector<16x256xf32>
    %c0_1 = arith.constant 0 : index
    %c0_2 = arith.constant 0 : index
    %1 = vector.load %arg2[%c0_1, %c0_2] : memref<256x256xf32, #tpu.memory_space<vmem>>, vector<256x256xf32>
    %cst = arith.constant dense<0.000000e+00> : vector<16x256xf32>
    %2 = tpu.matmul %0, %1, %cst {dimension_numbers = #tpu.dot_dimension_numbers<[1], [0], [0], [1], [0, 0, 1, 1], [], []>} : vector<16x256xf32>, vector<256x256xf32>, vector<16x256xf32> -> vector<16x256xf32>
    %c0_3 = arith.constant 0 : index
    %c0_4 = arith.constant 0 : index
    %3 = vector.load %arg3[%c0_3, %c0_4] : memref<1x256xf32, #tpu.memory_space<vmem>>, vector<1x256xf32>
    %4 = vector.broadcast %3 : vector<1x256xf32> to vector<16x256xf32>
    %5 = arith.addf %2, %4 : vector<16x256xf32>
    %6 = math.absf %5 : vector<16x256xf32>
    %cst_5 = arith.constant 0.707106769 : f32
    %7 = vector.broadcast %cst_5 : f32 to vector<16x256xf32>
    %8 = arith.mulf %6, %7 : vector<16x256xf32>
    %cst_6 = arith.constant 0.327591091 : f32
    %9 = vector.broadcast %cst_6 : f32 to vector<16x256xf32>
    %10 = arith.mulf %9, %8 : vector<16x256xf32>
    %cst_7 = arith.constant 1.000000e+00 : f32
    %11 = vector.broadcast %cst_7 : f32 to vector<16x256xf32>
    %12 = arith.addf %11, %10 : vector<16x256xf32>
    %cst_8 = arith.constant 1.000000e+00 : f32
    %13 = vector.broadcast %cst_8 : f32 to vector<16x256xf32>
    %14 = arith.divf %13, %12 : vector<16x256xf32>
    %cst_9 = arith.constant 1.06140542 : f32
    %15 = vector.broadcast %cst_9 : f32 to vector<16x256xf32>
    %16 = arith.mulf %15, %14 : vector<16x256xf32>
    %cst_10 = arith.constant -1.45315206 : f32
    %17 = vector.broadcast %cst_10 : f32 to vector<16x256xf32>
    %18 = arith.addf %16, %17 : vector<16x256xf32>
    %19 = arith.mulf %18, %14 : vector<16x256xf32>
    %cst_11 = arith.constant 1.42141378 : f32
    %20 = vector.broadcast %cst_11 : f32 to vector<16x256xf32>
    %21 = arith.addf %19, %20 : vector<16x256xf32>
    %22 = arith.mulf %21, %14 : vector<16x256xf32>
    %cst_12 = arith.constant -0.284496725 : f32
    %23 = vector.broadcast %cst_12 : f32 to vector<16x256xf32>
    %24 = arith.addf %22, %23 : vector<16x256xf32>
    %25 = arith.mulf %24, %14 : vector<16x256xf32>
    %cst_13 = arith.constant 0.254829586 : f32
    %26 = vector.broadcast %cst_13 : f32 to vector<16x256xf32>
    %27 = arith.addf %25, %26 : vector<16x256xf32>
    %28 = arith.mulf %27, %14 : vector<16x256xf32>
    %cst_14 = arith.constant 0.000000e+00 : f32
    %29 = vector.broadcast %cst_14 : f32 to vector<16x256xf32>
    %30 = arith.subf %29, %8 : vector<16x256xf32>
    %31 = arith.mulf %30, %8 : vector<16x256xf32>
    %32 = math.exp %31 : vector<16x256xf32>
    %33 = arith.mulf %28, %32 : vector<16x256xf32>
    %cst_15 = arith.constant 1.000000e+00 : f32
    %34 = vector.broadcast %cst_15 : f32 to vector<16x256xf32>
    %35 = arith.subf %34, %33 : vector<16x256xf32>
    %36 = arith.mulf %6, %35 : vector<16x256xf32>
    %37 = arith.addf %5, %36 : vector<16x256xf32>
    %cst_16 = arith.constant 5.000000e-01 : f32
    %38 = vector.broadcast %cst_16 : f32 to vector<16x256xf32>
    %39 = arith.mulf %38, %37 : vector<16x256xf32>
    %c0_17 = arith.constant 0 : index
    %c0_18 = arith.constant 0 : index
    %40 = vector.load %arg4[%c0_17, %c0_18] : memref<256x256xf32, #tpu.memory_space<vmem>>, vector<256x256xf32>
    %cst_19 = arith.constant dense<0.000000e+00> : vector<16x256xf32>
    %41 = tpu.matmul %39, %40, %cst_19 {dimension_numbers = #tpu.dot_dimension_numbers<[1], [0], [0], [1], [0, 0, 1, 1], [], []>} : vector<16x256xf32>, vector<256x256xf32>, vector<16x256xf32> -> vector<16x256xf32>
    %c0_20 = arith.constant 0 : index
    %c0_21 = arith.constant 0 : index
    %42 = vector.load %arg5[%c0_20, %c0_21] : memref<1x256xf32, #tpu.memory_space<vmem>>, vector<1x256xf32>
    %43 = vector.broadcast %42 : vector<1x256xf32> to vector<16x256xf32>
    %44 = arith.addf %41, %43 : vector<16x256xf32>
    %c0_22 = arith.constant 0 : index
    %c0_23 = arith.constant 0 : index
    %45 = vector.load %arg6[%c0_22, %c0_23] : memref<16x256xf32, #tpu.memory_space<vmem>>, vector<16x256xf32>
    tpu.vector_store %arg6[%c0_22, %c0_23], %44 {strides = array<i32>} : memref<16x256xf32, #tpu.memory_space<vmem>>, vector<16x256xf32>,
    return
  }
  func.func @transform_0(%arg0: i32) -> (i32, i32) {
    %c0_i32 = arith.constant 0 : i32
    %c0_i32_0 = arith.constant 0 : i32
    return %arg0, %c0_i32 : i32, i32
  }
  func.func @transform_1(%arg0: i32) -> (i32, i32) {
    %c0_i32 = arith.constant 0 : i32
    %c0_i32_0 = arith.constant 0 : i32
    %c0_i32_1 = arith.constant 0 : i32
    return %c0_i32, %c0_i32_0 : i32, i32
  }
  func.func @transform_2(%arg0: i32) -> (i32, i32) {
    %c0_i32 = arith.constant 0 : i32
    %c0_i32_0 = arith.constant 0 : i32
    %c0_i32_1 = arith.constant 0 : i32
    return %c0_i32, %c0_i32_0 : i32, i32
  }
  func.func @transform_3(%arg0: i32) -> (i32, i32) {
    %c0_i32 = arith.constant 0 : i32
    %c0_i32_0 = arith.constant 0 : i32
    %c0_i32_1 = arith.constant 0 : i32
    return %c0_i32, %c0_i32_0 : i32, i32
  }
  func.func @transform_4(%arg0: i32) -> (i32, i32) {
    %c0_i32 = arith.constant 0 : i32
    %c0_i32_0 = arith.constant 0 : i32
    %c0_i32_1 = arith.constant 0 : i32
    return %c0_i32, %c0_i32_0 : i32, i32
  }
  func.func @transform_5(%arg0: i32) -> (i32, i32) {
    %c0_i32 = arith.constant 0 : i32
    %c0_i32_0 = arith.constant 0 : i32
    return %arg0, %c0_i32 : i32, i32
  }
}

</mosaic_0001>

<llo_original>
// kernel: des_apply.1
$region0: #{des_apply.1}
  #allocation0 [shape = 'u32[]', space=smem, size = 0x4, offset = 0x4, fixed_abs, tag = 'smem constant byte address 0x4 - core index']
  #allocation1 [shape = 'u32[144,128]{1,0:T(1,128)}', space=vmem, size = 0x12000, scoped, tag = 'internal scratch']
  %s0 = inlined_call_operand.vmem [shape: f32[16,256], index: 0, kind: input, shape index: {}]
  %s1 = inlined_call_operand.hbm [shape: f32[256,256], index: 1, kind: input, shape index: {}]
  %s2 = inlined_call_operand.vmem [shape: f32[1,256], index: 2, kind: input, shape index: {}]
  %s3 = inlined_call_operand.hbm [shape: f32[256,256], index: 3, kind: input, shape index: {}]
  %s4 = inlined_call_operand.vmem [shape: f32[1,256], index: 4, kind: input, shape index: {}]
  %s5 = inlined_call_operand.vmem [shape: f32[16,256], index: 5, kind: output, shape index: {}]
  %s6 = sld [smem:[#allocation0]]
  $region38: #{des_apply.1} parent=0
    _
  %s8 = ssub.s32 1, %s6
  %s9 = scalar_select 0, %s8, %s6
  $region1: #{des_apply.1} parent=0
    #allocation2 [shape = 'u8[262144]{0}', space=vmem, size = 0x40000, scoped, tag = 'input window, operand 1, single buffered']
    #allocation3 [shape = 's32[1]{0}', space=sflag, size = 0x4, scoped, tag = 'scoped memory for des_apply.1']
    #allocation4 [shape = 'u8[262144]{0}', space=vmem, size = 0x40000, scoped, tag = 'input window, operand 3, single buffered']
    #allocation5 [shape = 's32[1]{0}', space=sflag, size = 0x4, scoped, tag = 'scoped memory for des_apply.1']
    %10 = vsyncpa [#allocation3], 0
    %11 = vsyncpa [#allocation5], 0
    // Predicated region
    $region2: #{des_apply.1} parent=1 // pred_check
      _
    $region3: #{des_apply.1} parent=1 // pred_check_branch
      %13 = sbr.rel (0) target = $region5
    $region4: #{des_apply.1} parent=1 // pred_region
      _
    $region5: #{des_apply.1} parent=1 // pred_fallthru
      _
    // Predicated region
    $region6: #{des_apply.1} parent=1 // pred_check
      _
    $region7: #{des_apply.1} parent=1 // pred_check_branch
      %15 = sbr.rel (0) target = $region9
    $region8: #{des_apply.1} parent=1 // pred_region
      %s17 = ssub.s32 8192, 8192
      %18 = vsyncadd [#allocation3], %s17
      %s19 = sshll.u32 [#allocation2], 4
      %s20 = int_to_ptr.vmem [resolvable:$true] %s19
      %25 = dma.hbm_to_vmem [thread:$0]  %s1, 8192, %s20, [#allocation3], 256, 256, 16
    $region9: #{des_apply.1} parent=1 // pred_fallthru
      _
    // Predicated region
    $region10: #{des_apply.1} parent=1 // pred_check
      _
    $region11: #{des_apply.1} parent=1 // pred_check_branch
      %27 = sbr.rel (0) target = $region13
    $region12: #{des_apply.1} parent=1 // pred_region
      _
    $region13: #{des_apply.1} parent=1 // pred_fallthru
      _
    // Predicated region
    $region14: #{des_apply.1} parent=1 // pred_check
      _
    $region15: #{des_apply.1} parent=1 // pred_check_branch
      %29 = sbr.rel (0) target = $region17
    $region16: #{des_apply.1} parent=1 // pred_region
      %s31 = ssub.s32 8192, 8192
      %32 = vsyncadd [#allocation5], %s31
      %s33 = sshll.u32 [#allocation4], 4
      %s34 = int_to_ptr.vmem [resolvable:$true] %s33
      %39 = dma.hbm_to_vmem [thread:$0]  %s3, 8192, %s34, [#allocation5], 256, 256, 16
    $region17: #{des_apply.1} parent=1 // pred_fallthru
      _
    // Predicated region
    $region18: #{des_apply.1} parent=1 // pred_check
      _
    $region19: #{des_apply.1} parent=1 // pred_check_branch
      %41 = sbr.rel (0) target = $region21
    $region20: #{des_apply.1} parent=1 // pred_region
      _
    $region21: #{des_apply.1} parent=1 // pred_fallthru
      _
    // Predicated region
    $region22: #{des_apply.1} parent=1 // pred_check
      _
    $region23: #{des_apply.1} parent=1 // pred_check_branch
      %43 = sbr.rel (0) target = $region25
    $region24: #{des_apply.1} parent=1 // pred_region
      %44 = dma.done [#allocation3], 8192
    $region25: #{des_apply.1} parent=1 // pred_fallthru
      _
    // Predicated region
    $region26: #{des_apply.1} parent=1 // pred_check
      _
    $region27: #{des_apply.1} parent=1 // pred_check_branch
      %46 = sbr.rel (0) target = $region29
    $region28: #{des_apply.1} parent=1 // pred_region
      %47 = dma.done [#allocation5], 8192
    $region29: #{des_apply.1} parent=1 // pred_fallthru
      _
    %v48 = vld [vmem:[%s0] sm:$0xff]
    %v49 = vld [vmem:[%s0 + $0x8] sm:$0xff]
    %v50 = vld [vmem:[%s0 + $0x10] sm:$0xff]
    %v51 = vld [vmem:[%s0 + $0x18] sm:$0xff]
    %v52 = vld [vmem:[#allocation2] sm:$0xff]
    %v53 = vld [vmem:[#allocation2 + $0x8] sm:$0xff]
    %v54 = vld [vmem:[#allocation2 + $0x10] sm:$0xff]
    %v55 = vld [vmem:[#allocation2 + $0x18] sm:$0xff]
    %v56 = vld [vmem:[#allocation2 + $0x20] sm:$0xff]
    %v57 = vld [vmem:[#allocation2 + $0x28] sm:$0xff]
    %v58 = vld [vmem:[#allocation2 + $0x30] sm:$0xff]
    %v59 = vld [vmem:[#allocation2 + $0x38] sm:$0xff]
    %v60 = vld [vmem:[#allocation2 + $0x40] sm:$0xff]
    %v61 = vld [vmem:[#allocation2 + $0x48] sm:$0xff]
    %v62 = vld [vmem:[#allocation2 + $0x50] sm:$0xff]
    %v63 = vld [vmem:[#allocation2 + $0x58] sm:$0xff]
    %v64 = vld [vmem:[#allocation2 + $0x60] sm:$0xff]
    %v65 = vld [vmem:[#allocation2 + $0x68] sm:$0xff]
    %v66 = vld [vmem:[#allocation2 + $0x70] sm:$0xff]
    %v67 = vld [vmem:[#allocation2 + $0x78] sm:$0xff]
    %v68 = vld [vmem:[#allocation2 + $0x80] sm:$0xff]
    %v69 = vld [vmem:[#allocation2 + $0x88] sm:$0xff]
    %v70 = vld [vmem:[#allocation2 + $0x90] sm:$0xff]
    %v71 = vld [vmem:[#allocation2 + $0x98] sm:$0xff]
    %v72 = vld [vmem:[#allocation2 + $0xa0] sm:$0xff]
    %v73 = vld [vmem:[#allocation2 + $0xa8] sm:$0xff]
    %v74 = vld [vmem:[#allocation2 + $0xb0] sm:$0xff]
    %v75 = vld [vmem:[#allocation2 + $0xb8] sm:$0xff]
    %v76 = vld [vmem:[#allocation2 + $0xc0] sm:$0xff]
    %v77 = vld [vmem:[#allocation2 + $0xc8] sm:$0xff]
    %v78 = vld [vmem:[#allocation2 + $0xd0] sm:$0xff]
    %v79 = vld [vmem:[#allocation2 + $0xd8] sm:$0xff]
    %v80 = vld [vmem:[#allocation2 + $0xe0] sm:$0xff]
    %v81 = vld [vmem:[#allocation2 + $0xe8] sm:$0xff]
    %v82 = vld [vmem:[#allocation2 + $0xf0] sm:$0xff]
    %v83 = vld [vmem:[#allocation2 + $0xf8] sm:$0xff]
    %v84 = vld [vmem:[#allocation2 + $0x100] sm:$0xff]
    %v85 = vld [vmem:[#allocation2 + $0x108] sm:$0xff]
    %v86 = vld [vmem:[#allocation2 + $0x110] sm:$0xff]
    %v87 = vld [vmem:[#allocation2 + $0x118] sm:$0xff]
    %v88 = vld [vmem:[#allocation2 + $0x120] sm:$0xff]
    %v89 = vld [vmem:[#allocation2 + $0x128] sm:$0xff]
    %v90 = vld [vmem:[#allocation2 + $0x130] sm:$0xff]
    %v91 = vld [vmem:[#allocation2 + $0x138] sm:$0xff]
    %v92 = vld [vmem:[#allocation2 + $0x140] sm:$0xff]
    %v93 = vld [vmem:[#allocation2 + $0x148] sm:$0xff]
    %v94 = vld [vmem:[#allocation2 + $0x150] sm:$0xff]
    %v95 = vld [vmem:[#allocation2 + $0x158] sm:$0xff]
    %v96 = vld [vmem:[#allocation2 + $0x160] sm:$0xff]
    %v97 = vld [vmem:[#allocation2 + $0x168] sm:$0xff]
    %v98 = vld [vmem:[#allocation2 + $0x170] sm:$0xff]
    %v99 = vld [vmem:[#allocation2 + $0x178] sm:$0xff]
    %v100 = vld [vmem:[#allocation2 + $0x180] sm:$0xff]
    %v101 = vld [vmem:[#allocation2 + $0x188] sm:$0xff]
    %v102 = vld [vmem:[#allocation2 + $0x190] sm:$0xff]
    %v103 = vld [vmem:[#allocation2 + $0x198] sm:$0xff]
    %v104 = vld [vmem:[#allocation2 + $0x1a0] sm:$0xff]
    %v105 = vld [vmem:[#allocation2 + $0x1a8] sm:$0xff]
    %v106 = vld [vmem:[#allocation2 + $0x1b0] sm:$0xff]
    %v107 = vld [vmem:[#allocation2 + $0x1b8] sm:$0xff]
    %v108 = vld [vmem:[#allocation2 + $0x1c0] sm:$0xff]
    %v109 = vld [vmem:[#allocation2 + $0x1c8] sm:$0xff]
    %v110 = vld [vmem:[#allocation2 + $0x1d0] sm:$0xff]
    %v111 = vld [vmem:[#allocation2 + $0x1d8] sm:$0xff]
    %v112 = vld [vmem:[#allocation2 + $0x1e0] sm:$0xff]
    %v113 = vld [vmem:[#allocation2 + $0x1e8] sm:$0xff]
    %v114 = vld [vmem:[#allocation2 + $0x1f0] sm:$0xff]
    %v115 = vld [vmem:[#allocation2 + $0x1f8] sm:$0xff]
    %v116 = vld [vmem:[%s2] sm:$0x3]
    %v118 = vlaneseq
    %v119 = vshrl.u32 %v118, 7
    %v120 = vsub.s32 0, %v119
    %v121 = vrot.slane %v116, %v120
    %v122 = vlaneseq
    %v123 = vshrl.u32 %v122, 7
    %v124 = vsub.s32 1, %v123
    %v125 = vrot.slane %v116, %v124
    %128 = vmatprep.subr.mxu0 %v83
    %129 = vmatpush1.msra.mxu0 %v82
    %130 = vmatprep.subr.mxu0 %v81
    %131 = vmatpush1.msra.mxu0 %v80
    %132 = vmatprep.subr.mxu0 %v79
    %133 = vmatpush1.msra.mxu0 %v78
    %134 = vmatprep.subr.mxu0 %v77
    %135 = vmatpush1.msra.mxu0 %v76
    %136 = vmatprep.subr.mxu0 %v75
    %137 = vmatpush1.msra.mxu0 %v74
    %138 = vmatprep.subr.mxu0 %v73
    %139 = vmatpush1.msra.mxu0 %v72
    %140 = vmatprep.subr.mxu0 %v71
    %141 = vmatpush1.msra.mxu0 %v70
    %142 = vmatprep.subr.mxu0 %v69
    %143 = vmatpush1.msra.mxu0 %v68
    %144 = vmatprep.subr.mxu0 %v67
    %145 = vmatpush1.msra.mxu0 %v66
    %146 = vmatprep.subr.mxu0 %v65
    %147 = vmatpush1.msra.mxu0 %v64
    %148 = vmatprep.subr.mxu0 %v63
    %149 = vmatpush1.msra.mxu0 %v62
    %150 = vmatprep.subr.mxu0 %v61
    %151 = vmatpush1.msra.mxu0 %v60
    %152 = vmatprep.subr.mxu0 %v59
    %153 = vmatpush1.msra.mxu0 %v58
    %154 = vmatprep.subr.mxu0 %v57
    %155 = vmatpush1.msra.mxu0 %v56
    %156 = vmatprep.subr.mxu0 %v55
    %157 = vmatpush1.msra.mxu0 %v54
    %158 = vmatprep.subr.mxu0 %v53
    %159 = vmatpush1.msra.mxu0 %v52
    %160 = vmatprep.subr.mxu0 %v115
    %161 = vmatpush2.msra.mxu0 %v114
    %162 = vmatprep.subr.mxu0 %v113
    %163 = vmatpush2.msra.mxu0 %v112
    %164 = vmatprep.subr.mxu0 %v111
    %165 = vmatpush2.msra.mxu0 %v110
    %166 = vmatprep.subr.mxu0 %v109
    %167 = vmatpush2.msra.mxu0 %v108
    %168 = vmatprep.subr.mxu0 %v107
    %169 = vmatpush2.msra.mxu0 %v106
    %170 = vmatprep.subr.mxu0 %v105
    %171 = vmatpush2.msra.mxu0 %v104
    %172 = vmatprep.subr.mxu0 %v103
    %173 = vmatpush2.msra.mxu0 %v102
    %174 = vmatprep.subr.mxu0 %v101
    %175 = vmatpush2.msra.mxu0 %v100
    %176 = vmatprep.subr.mxu0 %v99
    %177 = vmatpush2.msra.mxu0 %v98
    %178 = vmatprep.subr.mxu0 %v97
    %179 = vmatpush2.msra.mxu0 %v96
    %180 = vmatprep.subr.mxu0 %v95
    %181 = vmatpush2.msra.mxu0 %v94
    %182 = vmatprep.subr.mxu0 %v93
    %183 = vmatpush2.msra.mxu0 %v92
    %184 = vmatprep.subr.mxu0 %v91
    %185 = vmatpush2.msra.mxu0 %v90
    %186 = vmatprep.subr.mxu0 %v89
    %187 = vmatpush2.msra.mxu0 %v88
    %188 = vmatprep.subr.mxu0 %v87
    %189 = vmatpush2.msra.mxu0 %v86
    %190 = vmatprep.subr.mxu0 %v85
    %191 = vmatpush2.msra.mxu0 %v84
    %192 = vmatprep.mubr.f32.mxu0 %v49
    %193 = vmatmul.mubr.f32.gmra.mxu0 %v48
    %v194 = vpop.f32.mrf.mxu0
    %v195 = vadd.f32 %v121, %v194
    %v196 = vpop.f32.mrf.mxu0
    %v197 = vadd.f32 %v125, %v196
    %198 = vmatprep.mubr.f32.mxu0 %v51
    %199 = vmatmul.mubr.f32.gmra.mxu0 %v50
    %v200 = vpop.f32.mrf.mxu0
    %v201 = vadd.f32 %v121, %v200
    %v202 = vpop.f32.mrf.mxu0
    %v203 = vadd.f32 %v125, %v202
    %204 = vdwg.mxu0
    %v205 = vand.u32 2147483647, %v195
    %v206 = vand.u32 2147483647, %v197
    %v207 = vand.u32 2147483647, %v201
    %v208 = vand.u32 2147483647, %v203
    %v209 = vmul.f32 %v205, 0.70710677
    %v210 = vmul.f32 %v206, 0.70710677
    %v211 = vmul.f32 %v207, 0.70710677
    %v212 = vmul.f32 %v208, 0.70710677
    %v213 = vmul.f32 %v209, 0.3275911
    %v214 = vmul.f32 %v210, 0.3275911
    %v215 = vmul.f32 %v211, 0.3275911
    %v216 = vmul.f32 %v212, 0.3275911
    %v217 = vadd.f32 %v213, 1.0
    %v218 = vadd.f32 %v214, 1.0
    %v219 = vadd.f32 %v215, 1.0
    %v220 = vadd.f32 %v216, 1.0
    %v221 = vrcp.pop %v217
    %v222 = vmul.f32 1.0, %v221
    %v223 = vrcp.pop %v218
    %v224 = vmul.f32 1.0, %v223
    %v225 = vrcp.pop %v219
    %v226 = vmul.f32 1.0, %v225
    %v227 = vrcp.pop %v220
    %v228 = vmul.f32 1.0, %v227
    %v229 = vmul.f32 %v222, 1.0614054
    %v230 = vmul.f32 %v224, 1.0614054
    %v231 = vmul.f32 %v226, 1.0614054
    %v232 = vmul.f32 %v228, 1.0614054
    %v233 = vadd.f32 %v229, -1.4531521
    %v234 = vadd.f32 %v230, -1.4531521
    %v235 = vadd.f32 %v231, -1.4531521
    %v236 = vadd.f32 %v232, -1.4531521
    %v237 = vmul.f32 %v233, %v222
    %v238 = vmul.f32 %v234, %v224
    %v239 = vmul.f32 %v235, %v226
    %v240 = vmul.f32 %v236, %v228
    %v241 = vadd.f32 %v237, 1.4214138
    %v242 = vadd.f32 %v238, 1.4214138
    %v243 = vadd.f32 %v239, 1.4214138
    %v244 = vadd.f32 %v240, 1.4214138
    %v245 = vmul.f32 %v241, %v222
    %v246 = vmul.f32 %v242, %v224
    %v247 = vmul.f32 %v243, %v226
    %v248 = vmul.f32 %v244, %v228
    %v249 = vadd.f32 %v245, -0.28449672
    %v250 = vadd.f32 %v246, -0.28449672
    %v251 = vadd.f32 %v247, -0.28449672
    %v252 = vadd.f32 %v248, -0.28449672
    %v253 = vmul.f32 %v249, %v222
    %v254 = vmul.f32 %v250, %v224
    %v255 = vmul.f32 %v251, %v226
    %v256 = vmul.f32 %v252, %v228
    %v257 = vadd.f32 %v253, 0.2548296
    %v258 = vadd.f32 %v254, 0.2548296
    %v259 = vadd.f32 %v255, 0.2548296
    %v260 = vadd.f32 %v256, 0.2548296
    %v261 = vmul.f32 %v257, %v222
    %v262 = vmul.f32 %v258, %v224
    %v263 = vmul.f32 %v259, %v226
    %v264 = vmul.f32 %v260, %v228
    %v265 = vsub.f32 0.0, %v209
    %v266 = vsub.f32 0.0, %v210
    %v267 = vsub.f32 0.0, %v211
    %v268 = vsub.f32 0.0, %v212
    %v269 = vmul.f32 %v265, %v209
    %v270 = vmul.f32 %v266, %v210
    %v271 = vmul.f32 %v267, %v211
    %v272 = vmul.f32 %v268, %v212
    %v273 = vmul.f32 %v269, 1.442695
    %v274 = vpow.pop %v273
    %v275 = vmul.f32 %v270, 1.442695
    %v276 = vpow.pop %v275
    %v277 = vmul.f32 %v271, 1.442695
    %v278 = vpow.pop %v277
    %v279 = vmul.f32 %v272, 1.442695
    %v280 = vpow.pop %v279
    %v281 = vmul.f32 %v261, %v274
    %v282 = vmul.f32 %v262, %v276
    %v283 = vmul.f32 %v263, %v278
    %v284 = vmul.f32 %v264, %v280
    %v285 = vsub.f32 1.0, %v281
    %v286 = vsub.f32 1.0, %v282
    %v287 = vsub.f32 1.0, %v283
    %v288 = vsub.f32 1.0, %v284
    %v289 = vmul.f32 %v205, %v285
    %v290 = vmul.f32 %v206, %v286
    %v291 = vmul.f32 %v207, %v287
    %v292 = vmul.f32 %v208, %v288
    %v293 = vadd.f32 %v195, %v289
    %v294 = vadd.f32 %v197, %v290
    %v295 = vadd.f32 %v201, %v291
    %v296 = vadd.f32 %v203, %v292
    %v297 = vmul.f32 %v293, 0.5
    %v298 = vmul.f32 %v294, 0.5
    %v299 = vmul.f32 %v295, 0.5
    %v300 = vmul.f32 %v296, 0.5
    %v301 = vld [vmem:[#allocation4] sm:$0xff]
    %v302 = vld [vmem:[#allocation4 + $0x8] sm:$0xff]
    %v303 = vld [vmem:[#allocation4 + $0x10] sm:$0xff]
    %v304 = vld [vmem:[#allocation4 + $0x18] sm:$0xff]
    %v305 = vld [vmem:[#allocation4 + $0x20] sm:$0xff]
    %v306 = vld [vmem:[#allocation4 + $0x28] sm:$0xff]
    %v307 = vld [vmem:[#allocation4 + $0x30] sm:$0xff]
    %v308 = vld [vmem:[#allocation4 + $0x38] sm:$0xff]
    %v309 = vld [vmem:[#allocation4 + $0x40] sm:$0xff]
    %v310 = vld [vmem:[#allocation4 + $0x48] sm:$0xff]
    %v311 = vld [vmem:[#allocation4 + $0x50] sm:$0xff]
    %v312 = vld [vmem:[#allocation4 + $0x58] sm:$0xff]
    %v313 = vld [vmem:[#allocation4 + $0x60] sm:$0xff]
    %v314 = vld [vmem:[#allocation4 + $0x68] sm:$0xff]
    %v315 = vld [vmem:[#allocation4 + $0x70] sm:$0xff]
    %v316 = vld [vmem:[#allocation4 + $0x78] sm:$0xff]
    %v317 = vld [vmem:[#allocation4 + $0x80] sm:$0xff]
    %v318 = vld [vmem:[#allocation4 + $0x88] sm:$0xff]
    %v319 = vld [vmem:[#allocation4 + $0x90] sm:$0xff]
    %v320 = vld [vmem:[#allocation4 + $0x98] sm:$0xff]
    %v321 = vld [vmem:[#allocation4 + $0xa0] sm:$0xff]
    %v322 = vld [vmem:[#allocation4 + $0xa8] sm:$0xff]
    %v323 = vld [vmem:[#allocation4 + $0xb0] sm:$0xff]
    %v324 = vld [vmem:[#allocation4 + $0xb8] sm:$0xff]
    %v325 = vld [vmem:[#allocation4 + $0xc0] sm:$0xff]
    %v326 = vld [vmem:[#allocation4 + $0xc8] sm:$0xff]
    %v327 = vld [vmem:[#allocation4 + $0xd0] sm:$0xff]
    %v328 = vld [vmem:[#allocation4 + $0xd8] sm:$0xff]
    %v329 = vld [vmem:[#allocation4 + $0xe0] sm:$0xff]
    %v330 = vld [vmem:[#allocation4 + $0xe8] sm:$0xff]
    %v331 = vld [vmem:[#allocation4 + $0xf0] sm:$0xff]
    %v332 = vld [vmem:[#allocation4 + $0xf8] sm:$0xff]
    %v333 = vld [vmem:[#allocation4 + $0x100] sm:$0xff]
    %v334 = vld [vmem:[#allocation4 + $0x108] sm:$0xff]
    %v335 = vld [vmem:[#allocation4 + $0x110] sm:$0xff]
    %v336 = vld [vmem:[#allocation4 + $0x118] sm:$0xff]
    %v337 = vld [vmem:[#allocation4 + $0x120] sm:$0xff]
    %v338 = vld [vmem:[#allocation4 + $0x128] sm:$0xff]
    %v339 = vld [vmem:[#allocation4 + $0x130] sm:$0xff]
    %v340 = vld [vmem:[#allocation4 + $0x138] sm:$0xff]
    %v341 = vld [vmem:[#allocation4 + $0x140] sm:$0xff]
    %v342 = vld [vmem:[#allocation4 + $0x148] sm:$0xff]
    %v343 = vld [vmem:[#allocation4 + $0x150] sm:$0xff]
    %v344 = vld [vmem:[#allocation4 + $0x158] sm:$0xff]
    %v345 = vld [vmem:[#allocation4 + $0x160] sm:$0xff]
    %v346 = vld [vmem:[#allocation4 + $0x168] sm:$0xff]
    %v347 = vld [vmem:[#allocation4 + $0x170] sm:$0xff]
    %v348 = vld [vmem:[#allocation4 + $0x178] sm:$0xff]
    %v349 = vld [vmem:[#allocation4 + $0x180] sm:$0xff]
    %v350 = vld [vmem:[#allocation4 + $0x188] sm:$0xff]
    %v351 = vld [vmem:[#allocation4 + $0x190] sm:$0xff]
    %v352 = vld [vmem:[#allocation4 + $0x198] sm:$0xff]
    %v353 = vld [vmem:[#allocation4 + $0x1a0] sm:$0xff]
    %v354 = vld [vmem:[#allocation4 + $0x1a8] sm:$0xff]
    %v355 = vld [vmem:[#allocation4 + $0x1b0] sm:$0xff]
    %v356 = vld [vmem:[#allocation4 + $0x1b8] sm:$0xff]
    %v357 = vld [vmem:[#allocation4 + $0x1c0] sm:$0xff]
    %v358 = vld [vmem:[#allocation4 + $0x1c8] sm:$0xff]
    %v359 = vld [vmem:[#allocation4 + $0x1d0] sm:$0xff]
    %v360 = vld [vmem:[#allocation4 + $0x1d8] sm:$0xff]
    %v361 = vld [vmem:[#allocation4 + $0x1e0] sm:$0xff]
    %v362 = vld [vmem:[#allocation4 + $0x1e8] sm:$0xff]
    %v363 = vld [vmem:[#allocation4 + $0x1f0] sm:$0xff]
    %v364 = vld [vmem:[#allocation4 + $0x1f8] sm:$0xff]
    %v365 = vld [vmem:[%s4] sm:$0x3]
    %v367 = vlaneseq
    %v368 = vshrl.u32 %v367, 7
    %v369 = vsub.s32 0, %v368
    %v370 = vrot.slane %v365, %v369
    %v371 = vlaneseq
    %v372 = vshrl.u32 %v371, 7
    %v373 = vsub.s32 1, %v372
    %v374 = vrot.slane %v365, %v373
    %377 = vmatprep.subr.mxu0 %v332
    %378 = vmatpush1.msra.mxu0 %v331
    %379 = vmatprep.subr.mxu0 %v330
    %380 = vmatpush1.msra.mxu0 %v329
    %381 = vmatprep.subr.mxu0 %v328
    %382 = vmatpush1.msra.mxu0 %v327
    %383 = vmatprep.subr.mxu0 %v326
    %384 = vmatpush1.msra.mxu0 %v325
    %385 = vmatprep.subr.mxu0 %v324
    %386 = vmatpush1.msra.mxu0 %v323
    %387 = vmatprep.subr.mxu0 %v322
    %388 = vmatpush1.msra.mxu0 %v321
    %389 = vmatprep.subr.mxu0 %v320
    %390 = vmatpush1.msra.mxu0 %v319
    %391 = vmatprep.subr.mxu0 %v318
    %392 = vmatpush1.msra.mxu0 %v317
    %393 = vmatprep.subr.mxu0 %v316
    %394 = vmatpush1.msra.mxu0 %v315
    %395 = vmatprep.subr.mxu0 %v314
    %396 = vmatpush1.msra.mxu0 %v313
    %397 = vmatprep.subr.mxu0 %v312
    %398 = vmatpush1.msra.mxu0 %v311
    %399 = vmatprep.subr.mxu0 %v310
    %400 = vmatpush1.msra.mxu0 %v309
    %401 = vmatprep.subr.mxu0 %v308
    %402 = vmatpush1.msra.mxu0 %v307
    %403 = vmatprep.subr.mxu0 %v306
    %404 = vmatpush1.msra.mxu0 %v305
    %405 = vmatprep.subr.mxu0 %v304
    %406 = vmatpush1.msra.mxu0 %v303
    %407 = vmatprep.subr.mxu0 %v302
    %408 = vmatpush1.msra.mxu0 %v301
    %409 = vmatprep.subr.mxu0 %v364
    %410 = vmatpush2.msra.mxu0 %v363
    %411 = vmatprep.subr.mxu0 %v362
    %412 = vmatpush2.msra.mxu0 %v361
    %413 = vmatprep.subr.mxu0 %v360
    %414 = vmatpush2.msra.mxu0 %v359
    %415 = vmatprep.subr.mxu0 %v358
    %416 = vmatpush2.msra.mxu0 %v357
    %417 = vmatprep.subr.mxu0 %v356
    %418 = vmatpush2.msra.mxu0 %v355
    %419 = vmatprep.subr.mxu0 %v354
    %420 = vmatpush2.msra.mxu0 %v353
    %421 = vmatprep.subr.mxu0 %v352
    %422 = vmatpush2.msra.mxu0 %v351
    %423 = vmatprep.subr.mxu0 %v350
    %424 = vmatpush2.msra.mxu0 %v349
    %425 = vmatprep.subr.mxu0 %v348
    %426 = vmatpush2.msra.mxu0 %v347
    %427 = vmatprep.subr.mxu0 %v346
    %428 = vmatpush2.msra.mxu0 %v345
    %429 = vmatprep.subr.mxu0 %v344
    %430 = vmatpush2.msra.mxu0 %v343
    %431 = vmatprep.subr.mxu0 %v342
    %432 = vmatpush2.msra.mxu0 %v341
    %433 = vmatprep.subr.mxu0 %v340
    %434 = vmatpush2.msra.mxu0 %v339
    %435 = vmatprep.subr.mxu0 %v338
    %436 = vmatpush2.msra.mxu0 %v337
    %437 = vmatprep.subr.mxu0 %v336
    %438 = vmatpush2.msra.mxu0 %v335
    %439 = vmatprep.subr.mxu0 %v334
    %440 = vmatpush2.msra.mxu0 %v333
    %441 = vmatprep.mubr.f32.mxu0 %v298
    %442 = vmatmul.mubr.f32.gmra.mxu0 %v297
    %v443 = vpop.f32.mrf.mxu0
    %v444 = vadd.f32 %v370, %v443
    %v445 = vpop.f32.mrf.mxu0
    %v446 = vadd.f32 %v374, %v445
    %447 = vmatprep.mubr.f32.mxu0 %v300
    %448 = vmatmul.mubr.f32.gmra.mxu0 %v299
    %v449 = vpop.f32.mrf.mxu0
    %v450 = vadd.f32 %v370, %v449
    %v451 = vpop.f32.mrf.mxu0
    %v452 = vadd.f32 %v374, %v451
    %453 = vdwg.mxu0
    %454 = vst [vmem:[%s5] sm:$0xff] %v444
    %455 = vst [vmem:[%s5 + $0x8] sm:$0xff] %v446
    %456 = vst [vmem:[%s5 + $0x10] sm:$0xff] %v450
    %457 = vst [vmem:[%s5 + $0x18] sm:$0xff] %v452
    // Predicated region
    $region30: #{des_apply.1} parent=1 // pred_check
      _
    $region31: #{des_apply.1} parent=1 // pred_check_branch
      %459 = sbr.rel (0) target = $region33
    $region32: #{des_apply.1} parent=1 // pred_region
      _
    $region33: #{des_apply.1} parent=1 // pred_fallthru
      _
    // Predicated region
    $region34: #{des_apply.1} parent=1 // pred_check
      _
    $region35: #{des_apply.1} parent=1 // pred_check_branch
      %461 = sbr.rel (0) target = $region37
    $region36: #{des_apply.1} parent=1 // pred_region
      _
    $region37: #{des_apply.1} parent=1 // pred_fallthru
      _
    %462 = vsyncpa [#allocation3], 1
    %463 = vsyncpa [#allocation5], 1

</llo_original>
